<compile_context>
chip_gen: v5e
topology: v5e:2x2
jax: 0.10.0
libtpu: 0.0.40
codegen_flags: <defaults>
</compile_context>

<pallas_src>
import jax
import jax.numpy as jnp
from jax.experimental import pallas as pl
from jax.experimental.pallas import tpu as pltpu  # noqa: F401  (TPU backend)


def _silu_linear_kernel(x_ref, wb_ref, o_ref):
    # x_ref:  (M, K)      = (1, 101)
    # wb_ref: (N, K + 1)  = (7, 102), last column is the bias
    # o_ref:  (N, M)      = (7, 1)
    K = x_ref.shape[-1]
    w = wb_ref[:, :K]                       # (N, K)   weight rows
    b = wb_ref[:, K:]                       # (N, 1)   bias column
    # VPU multiply (broadcast over the N sublanes) + XLU lane-reduce.
    v1 = jnp.sum(x_ref[...] * w, axis=-1, keepdims=True) + b   # (N, 1)
    o_ref[...] = v1 * jax.nn.sigmoid(v1)    # SiLU, fused in-kernel


@jax.jit
def silu_linear(x, wb):
    """x: (M, K) f32, wb: (N, K+1) f32 (weight with bias folded in) -> (M, N)."""
    M, K = x.shape
    N, K1 = wb.shape
    assert K1 == K + 1

    out_nm = pl.pallas_call(
        _silu_linear_kernel,
        out_shape=jax.ShapeDtypeStruct((N, M), jnp.float32),
        in_specs=[
            pl.BlockSpec((M, K), lambda: (0, 0)),
            pl.BlockSpec((N, K + 1), lambda: (0, 0)),
        ],
        out_specs=pl.BlockSpec((N, M), lambda: (0, 0)),
        cost_estimate=pl.CostEstimate(
            flops=2 * M * K * N,
            transcendentals=M * N,
            bytes_accessed=4 * (M * K + N * (K + 1) + M * N),
        ),
    )(x, wb)
    # Layout plumbing only: (N, M) -> (M, N).
    return out_nm.T


if __name__ == "__main__":
    key = jax.random.PRNGKey(0)
    k_x, k_w, k_b = jax.random.split(key, 3)

    in_features, out_features = 101, 7

    # Deterministic parameter init (same distribution as torch.nn.Linear):
    # U(-1/sqrt(in_features), 1/sqrt(in_features))
    bound = 1.0 / jnp.sqrt(jnp.float32(in_features))
    w = jax.random.uniform(
        k_w, (out_features, in_features), jnp.float32, -bound, bound
    )
    b = jax.random.uniform(k_b, (out_features,), jnp.float32, -bound, bound)

    # Input matching torch.randn(1, 101)
    x = jax.random.normal(k_x, (1, in_features), jnp.float32)

    # --- model-load-time (one-off) parameter prep; NOT on the per-call path ---
    # Pack weight (N, K) and bias (N,) into a single (N, K+1) operand.
    wb = jnp.concatenate([w, b[:, None]], axis=-1)   # (7, 102)

    out = silu_linear(x, wb)
    out = jax.block_until_ready(out)

    # Pure-JAX reference check
    v1 = x @ w.T + b
    ref = v1 * jax.nn.sigmoid(v1)
    assert out.shape == (1, out_features)
    assert jnp.allclose(out, ref, atol=1e-5, rtol=1e-5)

    print("KERNEL_OK")
</pallas_src>

<mosaic_0001>
module attributes {stable_mosaic.version = 11 : i64} {
  func.func @_silu_linear_kernel(%arg0: memref<1x101xf32, #tpu.memory_space<vmem>>, %arg1: memref<7x102xf32, #tpu.memory_space<vmem>>, %arg2: memref<7x1xf32, #tpu.memory_space<vmem>>) attributes {dimension_semantics = [], scalar_prefetch = 0 : i64, scratch_operands = 0 : i64, tpu.core_type = #tpu.core_type<tc>} {
    %c0 = arith.constant 0 : index
    %c0_0 = arith.constant 0 : index
    %0 = vector.load %arg1[%c0, %c0_0] : memref<7x102xf32, #tpu.memory_space<vmem>>, vector<7x101xf32>
    %c0_1 = arith.constant 0 : index
    %c101 = arith.constant 101 : index
    %1 = vector.load %arg1[%c0_1, %c101] : memref<7x102xf32, #tpu.memory_space<vmem>>, vector<7x1xf32>
    %c0_2 = arith.constant 0 : index
    %c0_3 = arith.constant 0 : index
    %2 = vector.load %arg0[%c0_2, %c0_3] : memref<1x101xf32, #tpu.memory_space<vmem>>, vector<1x101xf32>
    %3 = vector.broadcast %2 : vector<1x101xf32> to vector<7x101xf32>
    %4 = arith.mulf %3, %0 : vector<7x101xf32>
    %cst = arith.constant dense<0.000000e+00> : vector<7xf32>
    %5 = vector.multi_reduction <add>, %4, %cst [1] : vector<7x101xf32> to vector<7xf32>
    %6 = vector.shape_cast %5 : vector<7xf32> to vector<7x1xf32>
    %7 = arith.addf %6, %1 : vector<7x1xf32>
    %8 = arith.negf %7 : vector<7x1xf32>
    %9 = math.exp %8 : vector<7x1xf32>
    %cst_4 = arith.constant 1.000000e+00 : f32
    %10 = vector.broadcast %cst_4 : f32 to vector<7x1xf32>
    %11 = arith.addf %10, %9 : vector<7x1xf32>
    %12 = arith.divf %10, %11 : vector<7x1xf32>
    %13 = arith.mulf %7, %12 : vector<7x1xf32>
    %c0_5 = arith.constant 0 : index
    %c0_6 = arith.constant 0 : index
    %14 = vector.load %arg2[%c0_5, %c0_6] : memref<7x1xf32, #tpu.memory_space<vmem>>, vector<7x1xf32>
    tpu.vector_store %arg2[%c0_5, %c0_6], %13 {strides = array<i32>} : memref<7x1xf32, #tpu.memory_space<vmem>>, vector<7x1xf32>,
    return
  }
}

</mosaic_0001>

<llo_original>
// kernel: silu_linear.1
$region0: #{silu_linear.1}
  #allocation0 [shape = 'u32[]', space=smem, size = 0x4, offset = 0x4, fixed_abs, tag = 'smem constant byte address 0x4 - core index']
  #allocation1 [shape = 'u32[72,128]{1,0:T(1,128)}', space=vmem, size = 0x9000, scoped, tag = 'internal scratch']
  %s0 = inlined_call_operand.hbm [shape: f32[1,101], index: 0, kind: input, shape index: {}]
  %s1 = inlined_call_operand.hbm [shape: f32[7,102], index: 1, kind: input, shape index: {}]
  %s2 = inlined_call_operand.vmem [shape: f32[7,1], index: 2, kind: output, shape index: {}]
  %s3 = sld [smem:[#allocation0]]
  $region26: #{silu_linear.1} parent=0
    _
  %s5 = ssub.s32 1, %s3
  %s6 = scalar_select 0, %s5, %s3
  $region1: #{silu_linear.1} parent=0
    #allocation2 [shape = 'u8[512]{0}', space=vmem, size = 0x400, scoped, tag = 'input window, operand 0, single buffered']
    #allocation3 [shape = 's32[1]{0}', space=sflag, size = 0x4, scoped, tag = 'scoped memory for silu_linear.1']
    #allocation4 [shape = 'u8[4096]{0}', space=vmem, size = 0x1000, scoped, tag = 'input window, operand 1, single buffered']
    #allocation5 [shape = 's32[1]{0}', space=sflag, size = 0x4, scoped, tag = 'scoped memory for silu_linear.1']
    %7 = vsyncpa [#allocation3], 0
    %8 = vsyncpa [#allocation5], 0
    // Predicated region
    $region2: #{silu_linear.1} parent=1 // pred_check
      _
    $region3: #{silu_linear.1} parent=1 // pred_check_branch
      %10 = sbr.rel (0) target = $region5
    $region4: #{silu_linear.1} parent=1 // pred_region
      %12 = vsyncadd [#allocation3], 0
      %s14 = sshll.u32 %s0, 4
      %s15 = int_to_ptr.hbm [resolvable:$true] %s14
      %s16 = sshll.u32 [#allocation2], 4
      %s17 = int_to_ptr.vmem [resolvable:$true] %s16
      %19 = dma.hbm_to_vmem [thread:$0]  %s15, 16, %s17, [#allocation3]
    $region5: #{silu_linear.1} parent=1 // pred_fallthru
      _
    // Predicated region
    $region6: #{silu_linear.1} parent=1 // pred_check
      _
    $region7: #{silu_linear.1} parent=1 // pred_check_branch
      %21 = sbr.rel (0) target = $region9
    $region8: #{silu_linear.1} parent=1 // pred_region
      %23 = vsyncadd [#allocation5], 0
      %s25 = sshll.u32 %s1, 4
      %s26 = int_to_ptr.hbm [resolvable:$true] %s25
      %s27 = sshll.u32 [#allocation4], 4
      %s28 = int_to_ptr.vmem [resolvable:$true] %s27
      %30 = dma.hbm_to_vmem [thread:$0]  %s26, 128, %s28, [#allocation5]
    $region9: #{silu_linear.1} parent=1 // pred_fallthru
      _
    // Predicated region
    $region10: #{silu_linear.1} parent=1 // pred_check
      _
    $region11: #{silu_linear.1} parent=1 // pred_check_branch
      %32 = sbr.rel (0) target = $region13
    $region12: #{silu_linear.1} parent=1 // pred_region
      %34 = dma.done [#allocation3], 16
    $region13: #{silu_linear.1} parent=1 // pred_fallthru
      _
    // Predicated region
    $region14: #{silu_linear.1} parent=1 // pred_check
      _
    $region15: #{silu_linear.1} parent=1 // pred_check_branch
      %36 = sbr.rel (0) target = $region17
    $region16: #{silu_linear.1} parent=1 // pred_region
      %38 = dma.done [#allocation5], 128
    $region17: #{silu_linear.1} parent=1 // pred_fallthru
      _
    %v39 = vld [vmem:[#allocation4] sm:$0x7f]
    %v40 = vld [vmem:[#allocation2] sm:$0x1]
    %v42 = vperm.slane %v40, 0
    %v44 = vmul.f32 %v42, %v39
    %vm45 = vcmask 825344
    %v46 = vsel %vm45, %v44, 0.0
    %47 = vadd.xlane.f32.xlu0 %v46
    %v48 = vpop.xlane.xlu0 %47
    %v49 = vadd.f32 %v48, %v39
    %v50 = vxor.u32 %v49, 2147483648
    %v51 = vmul.f32 %v50, 1.442695
    %v52 = vpow.pop %v51
    %v53 = vadd.f32 %v52, 1.0
    %v54 = vrcp.pop %v53
    %v55 = vmul.f32 %v53, %v54
    %v56 = vsub.f32 1.0, %v55
    %v57 = vmul.f32 %v54, %v56
    %v58 = vadd.f32 %v54, %v57
    %vm59 = vweird.f32 %v53
    %vm60 = vweird.f32 %v54
    %vm61 = vmor %vm59, %vm60
    %v62 = vsel %vm61, %v54, %v58
    %v63 = vand.u32 2147483647, %v53
    %vm64 = vcmp.eq.f32.partialorder %v63, 8.507059e+37
    %v65 = vand.u32 %v53, 2147483648
    %v66 = vor.u32 1.1754944e-38, %v65
    %v67 = vsel %vm64, %v66, %v62
    %v68 = vmul.f32 1.0, %v67
    %v69 = vmul.f32 %v49, %v68
    %71 = vrot.lane.b32.xlu0 %v69, 27
    %v72 = vpop.permute.xlu0 %71
    %vm74 = vcmask 6144
    %75 = vst.msk [vmem:[%s2] sm:$0x7f] %vm74, %v72
    // Predicated region
    $region18: #{silu_linear.1} parent=1 // pred_check
      _
    $region19: #{silu_linear.1} parent=1 // pred_check_branch
      %77 = sbr.rel (0) target = $region21
    $region20: #{silu_linear.1} parent=1 // pred_region
      _
    $region21: #{silu_linear.1} parent=1 // pred_fallthru
      _
    // Predicated region
    $region22: #{silu_linear.1} parent=1 // pred_check
      _
    $region23: #{silu_linear.1} parent=1 // pred_check_branch
      %79 = sbr.rel (0) target = $region25
    $region24: #{silu_linear.1} parent=1 // pred_region
      _
    $region25: #{silu_linear.1} parent=1 // pred_fallthru
      _
    %80 = vsyncpa [#allocation3], 1
    %81 = vsyncpa [#allocation5], 1

</llo_original>
